<compile_context>
chip_gen: v7x
topology: tpu7x:2x2x1
jax: 0.10.0
libtpu: 0.0.40
codegen_flags: <defaults>
</compile_context>

<pallas_src>
import functools
import math

import jax
import jax.numpy as jnp
from jax.experimental import pallas as pl
from jax.experimental.pallas import tpu as pltpu


def _spatial_softmax_kernel(x_ref, g_ref, o_ref, *, temperature, n_out):
    # x_ref: (1, TC, S)   one channel tile of one batch element
    # g_ref: (K+1, S)     flattened coord grids (+ squared grids) + a trailing ones row
    # o_ref: (1, K, TC)   expected coords, transposed (channels on the lane dim)
    x = x_ref[0].astype(jnp.float32)                       # (TC, S)
    if temperature != 1.0:                                 # static (trace-time) branch
        x = x * (1.0 / temperature)
    m = jnp.max(x, axis=-1, keepdims=True)                 # (TC, 1)
    e = jnp.exp(x - m)                                     # (TC, S) unnormalized softmax
    g = g_ref[...]                                         # (K+1, S), already f32
    # Contract S of both operands directly (A @ B^T form, no transpose materialized):
    #   raw[k, c] = sum_s g[k, s] * e[c, s]                -> (K+1, TC)
    raw = jax.lax.dot_general(
        g, e, (((1,), (1,)), ((), ())), preferred_element_type=jnp.float32
    )
    denom = raw[n_out:n_out + 1, :]                        # (1, TC): sum_s e (ones row)
    coords = raw[:n_out, :] / denom                        # (K, TC) exact divide (tiny)
    o_ref[0] = coords.astype(o_ref.dtype)


def _choose_channel_tile(n_channels: int, s: int, in_itemsize: int, batch: int,
                         budget_bytes: int = 12 << 20) -> int:
    """Largest channel tile whose double-buffered input + f32 intermediates fit the budget.

    When tiling is needed the tile is a multiple of 128 so the transposed (K, TC)
    output block stays lane-aligned.
    """
    per_row = s * (2 * in_itemsize + 8)          # 2x buffered input + ~2 f32 temporaries
    max_rows = max(1, budget_bytes // per_row)
    # With a single batch element, keep >= 2 grid cells so both v7x TCs get work.
    if batch == 1 and n_channels >= 256:
        max_rows = min(max_rows, (n_channels + 1) // 2)
    if n_channels <= max_rows or n_channels < 128:
        return n_channels                         # block == full C (always legal)
    tc = max(128, (max_rows // 128) * 128)        # lane-aligned tile
    return min(tc, n_channels)


def spatial_softmax(x, temperature: float = 1.0, output_variance: bool = False):
    """Pallas implementation of SpatialSoftmax.forward.

    x: (B, C, *spatial_dims) with 1 or 2 spatial dims (matching the torch asserts).
    Returns (B, C, n_spatial) or (B, C, 2*n_spatial) if output_variance.
    """
    assert x.ndim in (3, 4)
    batch_size, n_channels = x.shape[:2]
    spatial_dims = x.shape[2:]
    S = math.prod(spatial_dims)

    # Flattened coordinate grids built in plain JAX (glue, not hot path).
    # torch.meshgrid default indexing is 'ij'.
    lins = [jnp.linspace(-1.0, 1.0, d, dtype=jnp.float32) for d in spatial_dims]
    mesh_grids = jnp.meshgrid(*lins, indexing="ij")
    grids = jnp.stack([g.reshape(-1) for g in mesh_grids], axis=0)      # (n_spatial, S)
    if output_variance:
        # NOTE: matches the given module exactly: it concatenates E[g^2], not Var[g].
        grids = jnp.concatenate([grids, grids ** 2], axis=0)            # (2*n_spatial, S)
    K = grids.shape[0]
    # Append a ones row so the softmax denominator comes out of the same matmul.
    grids_aug = jnp.concatenate([grids, jnp.ones((1, S), jnp.float32)], axis=0)  # (K+1, S)

    x_flat = x.reshape(batch_size, n_channels, S)

    TC = _choose_channel_tile(n_channels, S, x.dtype.itemsize, batch_size)
    n_c_tiles = pl.cdiv(n_channels, TC)

    kernel = functools.partial(
        _spatial_softmax_kernel, temperature=float(temperature), n_out=K
    )

    out_t = pl.pallas_call(
        kernel,
        out_shape=jax.ShapeDtypeStruct((batch_size, K, n_channels), x.dtype),
        grid_spec=pltpu.PrefetchScalarGridSpec(
            num_scalar_prefetch=0,
            grid=(batch_size, n_c_tiles),
            in_specs=[
                pl.BlockSpec((1, TC, S), lambda b, c: (b, c, 0)),
                pl.BlockSpec((K + 1, S), lambda b, c: (0, 0)),   # VMEM-resident constant
            ],
            out_specs=pl.BlockSpec((1, K, TC), lambda b, c: (b, 0, c)),
        ),
        compiler_params=pltpu.CompilerParams(
            dimension_semantics=("parallel", "parallel"),
            vmem_limit_bytes=48 << 20,   # headroom over v5e's 16 MiB scoped default
        ),
    )(x_flat, grids_aug)

    # Cheap wrapper transpose back to the module's (B, C, K) layout.
    return jnp.swapaxes(out_t, 1, 2)


def _reference(x, temperature=1.0, output_variance=False):
    """Plain-JAX reference mirroring the PyTorch module, for a sanity check."""
    batch_size, n_channels = x.shape[:2]
    spatial_dims = x.shape[2:]
    xf = x.reshape(batch_size, n_channels, -1)
    p = jax.nn.softmax(xf / temperature, axis=-1)
    lins = [jnp.linspace(-1.0, 1.0, d, dtype=jnp.float32) for d in spatial_dims]
    mgs = jnp.meshgrid(*lins, indexing="ij")
    outs = []
    for g in mgs:
        outs.append(jnp.sum(p * g.reshape(1, 1, -1), axis=-1))
    if output_variance:
        for g in mgs:
            outs.append(jnp.sum(p * (g.reshape(1, 1, -1) ** 2), axis=-1))
    return jnp.stack(outs, axis=-1)


if __name__ == "__main__":
    key = jax.random.PRNGKey(0)
    k4, k3 = jax.random.split(key)

    # 4-D input (2 spatial dims)
    B, C, H, W = 2, 4, 16, 16
    x = jax.random.normal(k4, (B, C, H, W), dtype=jnp.float32)

    out = spatial_softmax(x, temperature=1.0, output_variance=False)
    out = jax.block_until_ready(out)
    assert out.shape == (B, C, 2), out.shape
    ref = _reference(x, temperature=1.0, output_variance=False)
    assert jnp.allclose(out, ref, atol=1e-5, rtol=1e-5), float(jnp.max(jnp.abs(out - ref)))

    # output_variance=True path (and a non-unit temperature)
    out_var = spatial_softmax(x, temperature=2.0, output_variance=True)
    out_var = jax.block_until_ready(out_var)
    assert out_var.shape == (B, C, 4), out_var.shape
    ref_var = _reference(x, temperature=2.0, output_variance=True)
    assert jnp.allclose(out_var, ref_var, atol=1e-5, rtol=1e-5)

    # 3-D input (1 spatial dim)
    x3 = jax.random.normal(k3, (2, 4, 16), dtype=jnp.float32)
    out3 = spatial_softmax(x3, temperature=1.0, output_variance=False)
    out3 = jax.block_until_ready(out3)
    assert out3.shape == (2, 4, 1), out3.shape
    ref3 = _reference(x3, temperature=1.0, output_variance=False)
    assert jnp.allclose(out3, ref3, atol=1e-5, rtol=1e-5)

    print("KERNEL_OK")
</pallas_src>

<mosaic_0001>
module attributes {stable_mosaic.version = 11 : i64} {
  func.func @_spatial_softmax_kernel(%arg0: i32, %arg1: i32, %arg2: memref<1x4x256xf32, #tpu.memory_space<vmem>>, %arg3: memref<3x256xf32, #tpu.memory_space<vmem>>, %arg4: memref<1x2x4xf32, #tpu.memory_space<vmem>>) attributes {dimension_semantics = [#tpu.dimension_semantics<parallel>, #tpu.dimension_semantics<parallel>], iteration_bounds = array<i64: 2, 1>, scalar_prefetch = 0 : i64, scratch_operands = 0 : i64, tpu.core_type = #tpu.core_type<tc>, window_params = [{transform_indices = @transform_0, window_bounds = array<i64: 1, 4, 256>}, {pipeline_mode = #tpu.pipeline_mode<synchronous>, transform_indices = @transform_1, window_bounds = array<i64: 3, 256>}, {transform_indices = @transform_2, window_bounds = array<i64: 1, 2, 4>}]} {
    %c0 = arith.constant 0 : index
    %c0_0 = arith.constant 0 : index
    %c0_1 = arith.constant 0 : index
    %0 = vector.load %arg2[%c0, %c0_0, %c0_1] : memref<1x4x256xf32, #tpu.memory_space<vmem>>, vector<1x4x256xf32>
    %1 = vector.shape_cast %0 : vector<1x4x256xf32> to vector<4x256xf32>
    %cst = arith.constant dense<0xFF800000> : vector<4xf32>
    %2 = vector.multi_reduction <maximumf>, %1, %cst [1] : vector<4x256xf32> to vector<4xf32>
    %3 = vector.shape_cast %2 : vector<4xf32> to vector<4x1xf32>
    %4 = vector.broadcast %3 : vector<4x1xf32> to vector<4x256xf32>
    %5 = arith.subf %1, %4 : vector<4x256xf32>
    %6 = math.exp %5 : vector<4x256xf32>
    %c0_2 = arith.constant 0 : index
    %c0_3 = arith.constant 0 : index
    %7 = vector.load %arg3[%c0_2, %c0_3] : memref<3x256xf32, #tpu.memory_space<vmem>>, vector<3x256xf32>
    %cst_4 = arith.constant dense<0.000000e+00> : vector<3x4xf32>
    %8 = tpu.matmul %7, %6, %cst_4 {dimension_numbers = #tpu.dot_dimension_numbers<[1], [1], [0], [0], [0, 0, 1, 0], [], []>} : vector<3x256xf32>, vector<4x256xf32>, vector<3x4xf32> -> vector<3x4xf32>
    %9 = vector.extract_strided_slice %8 {offsets = [2, 0], sizes = [1, 4], strides = [1, 1]} : vector<3x4xf32> to vector<1x4xf32>
    %10 = vector.extract_strided_slice %8 {offsets = [0, 0], sizes = [2, 4], strides = [1, 1]} : vector<3x4xf32> to vector<2x4xf32>
    %11 = vector.broadcast %9 : vector<1x4xf32> to vector<2x4xf32>
    %12 = arith.divf %10, %11 : vector<2x4xf32>
    %c0_5 = arith.constant 0 : index
    %c0_6 = arith.constant 0 : index
    %c0_7 = arith.constant 0 : index
    %13 = vector.load %arg4[%c0_5, %c0_6, %c0_7] : memref<1x2x4xf32, #tpu.memory_space<vmem>>, vector<1x2x4xf32>
    %14 = vector.shape_cast %13 : vector<1x2x4xf32> to vector<2x4xf32>
    %15 = vector.shape_cast %12 : vector<2x4xf32> to vector<1x2x4xf32>
    tpu.vector_store %arg4[%c0_5, %c0_6, %c0_7], %15 {strides = array<i32>} : memref<1x2x4xf32, #tpu.memory_space<vmem>>, vector<1x2x4xf32>,
    return
  }
  func.func @transform_0(%arg0: i32, %arg1: i32) -> (i32, i32, i32) {
    %c0_i32 = arith.constant 0 : i32
    %c0_i32_0 = arith.constant 0 : i32
    return %arg0, %arg1, %c0_i32 : i32, i32, i32
  }
  func.func @transform_1(%arg0: i32, %arg1: i32) -> (i32, i32) {
    %c0_i32 = arith.constant 0 : i32
    %c0_i32_0 = arith.constant 0 : i32
    %c0_i32_1 = arith.constant 0 : i32
    return %c0_i32, %c0_i32_0 : i32, i32
  }
  func.func @transform_2(%arg0: i32, %arg1: i32) -> (i32, i32, i32) {
    %c0_i32 = arith.constant 0 : i32
    %c0_i32_0 = arith.constant 0 : i32
    return %arg0, %c0_i32, %arg1 : i32, i32, i32
  }
}

</mosaic_0001>

<llo_original>
// kernel: tpu_custom_call.1
$region0: #{tpu_custom_call.1}
  #allocation0 [shape = 'u32[]', space=smem, size = 0x4, offset = 0x4, fixed_abs, tag = 'smem constant byte address 0x4 - core index']
  #allocation1 [shape = 'u32[144,128]{1,0:T(1,128)}', space=vmem, size = 0x12000, scoped, tag = 'internal scratch']
  %s0 = inlined_call_operand.hbm [shape: f32[2,4,256], index: 0, kind: input, shape index: {}]
  %s1 = inlined_call_operand.hbm [shape: f32[3,256], index: 1, kind: input, shape index: {}]
  %s2 = inlined_call_operand.hbm [shape: f32[2,2,4], index: 2, kind: output, shape index: {}]
  %s3 = sld [smem:[#allocation0]]
  $region49: #{tpu_custom_call.1} parent=0
    _
  %s5 = ssub.s32 1, %s3
  %s6 = scalar_select 0, %s5, %s3
  $region1: #{tpu_custom_call.1} parent=0
    #allocation2 [shape = 'u8[8192]{0}', space=vmem, size = 0x2000, scoped, tag = 'input window, operand 0']
    #allocation3 [shape = 's32[2]{0}', space=sflag, size = 0x8, scoped, tag = 'scoped memory for tpu_custom_call.1']
    #allocation4 [shape = 's32[2]{0}', space=sflag, size = 0x8, scoped, tag = 'scoped memory for tpu_custom_call.1']
    #allocation5 [shape = 'u8[4096]{0}', space=vmem, size = 0x1000, scoped, tag = 'input window, operand 1, single buffered']
    #allocation6 [shape = 's32[1]{0}', space=sflag, size = 0x4, scoped, tag = 'scoped memory for tpu_custom_call.1']
    #allocation7 [shape = 'u8[2048]{0}', space=vmem, size = 0x800, scoped, tag = 'output window, operand 0']
    %7 = vsyncpa [#allocation3], 0
    %s8 = scalar_lea.sflag [#allocation3], 1
    %9 = vsyncpa %s8, 0
    %10 = vsyncpa [#allocation6], 0
    %11 = vsyncpa [#allocation4], 0
    %s12 = scalar_lea.sflag [#allocation4], 1
    %13 = vsyncpa %s12, 0
    loop: start=0, step=1, limit=4
    $region2: #{tpu_custom_call.1} parent=1 // loop_pre_header
      _
    $region3: #{tpu_custom_call.1} parent=1 // loop_header
      %s15 = sphi 0, %s19
      %p16 = scmp.ge.s32.totalorder %s15, 4
      %s22 = sphi 0, %s34
      %s23 = sphi 0, %s30
      %s24 = sphi 0, %s22
      %s25 = sphi 0, %s23
      %s26 = sphi 0, %s24
      %s27 = sphi 0, %s25
      %s39 = sphi 0, %s41
      %s42 = sphi 0, %s39
      %s43 = sphi 0, %s42
      %s59 = sphi 0, %s43
      %s63 = sphi 0, %s63
      %s65 = sphi 0, %s63
      %s66 = sphi 0, %s65
      %s80 = sphi 0, %s66
      %s88 = sphi 0, %s90
      %s91 = sphi 0, %s88
      %s92 = sphi 0, %s91
      %s108 = sphi 0, %s92
    $region4: #{tpu_custom_call.1} parent=1 // loop_header_branch
      %18 = sbr.rel (%p16) target = $region8
    $region5: #{tpu_custom_call.1} parent=1 // loop_body
      %s20 = ssub.s32 %s15, 1
      %s21 = ssub.s32 %s15, 2
      %s28 = sadd.s32 1, %s23
      %p29 = scmp.ge.s32.totalorder %s28, 1
      %s30 = scalar_select %p29, 0, %s28
      %s31 = sadd.s32 1, %s22
      %s32 = scalar_select %p29, %s31, %s22
      %p33 = scmp.ge.s32.totalorder %s32, 2
      %s34 = scalar_select %p33, 0, %s32
      %s35 = ssub.s32 %s22, %s34
      %s36 = ssub.s32 %s23, %s30
      %s37 = sor.u32 %s35, %s36
      %p38 = scmp.eq.s32.totalorder %s37, 0
      %s40 = sadd.s32 %s39, 1
      %s41 = scalar_select %p38, %s39, %s40
      %p44 = pneg %p38
      %p45 = scmp.eq.s32.totalorder %s15, 1
      %p46 = por %p44, %p45
      %p47 = scmp.ne.s32.totalorder %s39, %s42
      %p48 = scmp.eq.s32.totalorder %s15, 0
      %p49 = por %p47, %p48
      %p50 = scmp.ne.s32.totalorder %s39, %s42
      %p51 = scmp.eq.s32.totalorder %s20, 1
      %p52 = por %p50, %p51
      %p53 = scmp.ne.s32.totalorder %s42, %s43
      %p54 = scmp.eq.s32.totalorder %s20, 0
      %p55 = por %p53, %p54
      %p56 = scmp.ne.s32.totalorder %s42, %s43
      %p57 = scmp.eq.s32.totalorder %s21, 1
      %p58 = por %p56, %p57
      %p60 = scmp.ne.s32.totalorder %s43, %s59
      %p61 = scmp.eq.s32.totalorder %s21, 0
      %p62 = por %p60, %p61
      %s64 = sadd.s32 %s63, 1
      %p67 = scmp.eq.s32.totalorder %s15, 1
      %p68 = scmp.ne.s32.totalorder %s63, %s65
      %p69 = scmp.eq.s32.totalorder %s15, 0
      %p70 = por %p68, %p69
      %p71 = scmp.ne.s32.totalorder %s63, %s65
      %p72 = scmp.eq.s32.totalorder %s20, 1
      %p73 = por %p71, %p72
      %p74 = scmp.ne.s32.totalorder %s65, %s66
      %p75 = scmp.eq.s32.totalorder %s20, 0
      %p76 = por %p74, %p75
      %p77 = scmp.ne.s32.totalorder %s65, %s66
      %p78 = scmp.eq.s32.totalorder %s21, 1
      %p79 = por %p77, %p78
      %p81 = scmp.ne.s32.totalorder %s66, %s80
      %p82 = scmp.eq.s32.totalorder %s21, 0
      %p83 = por %p81, %p82
      %s84 = ssub.s32 %s22, %s34
      %s85 = ssub.s32 %s23, %s30
      %s86 = sor.u32 %s84, %s85
      %p87 = scmp.eq.s32.totalorder %s86, 0
      %s89 = sadd.s32 %s88, 1
      %s90 = scalar_select %p87, %s88, %s89
      %p93 = pneg %p87
      %p94 = scmp.eq.s32.totalorder %s15, 1
      %p95 = por %p93, %p94
      %p96 = scmp.ne.s32.totalorder %s88, %s91
      %p97 = scmp.eq.s32.totalorder %s15, 0
      %p98 = por %p96, %p97
      %p99 = scmp.ne.s32.totalorder %s88, %s91
      %p100 = scmp.eq.s32.totalorder %s20, 1
      %p101 = por %p99, %p100
      %p102 = scmp.ne.s32.totalorder %s91, %s92
      %p103 = scmp.eq.s32.totalorder %s20, 0
      %p104 = por %p102, %p103
      %p105 = scmp.ne.s32.totalorder %s91, %s92
      %p106 = scmp.eq.s32.totalorder %s21, 1
      %p107 = por %p105, %p106
      %p109 = scmp.ne.s32.totalorder %s92, %s108
      %p110 = scmp.eq.s32.totalorder %s21, 0
      %p111 = por %p109, %p110
      %p112 = scmp.le.s32.totalorder 1, %s15
      %p113 = scmp.lt.s32.totalorder %s15, 3
      %p114 = pnand %p112, %p113
      %p115 = pneg %p114
      // Predicated region
      $region9: #{tpu_custom_call.1} parent=5 // pred_check
        _
      $region10: #{tpu_custom_call.1} parent=5 // pred_check_branch
        %117 = sbr.rel (%p114) target = $region12
      $region11: #{tpu_custom_call.1} parent=5 // pred_region
        %s118 = ssub.s32 %s15, 1
        // Predicated region
        $region13: #{tpu_custom_call.1} parent=11 // pred_check
          %p119 = pneg %p76
        $region14: #{tpu_custom_call.1} parent=11 // pred_check_branch
          %121 = sbr.rel (%p119) target = $region16
        $region15: #{tpu_custom_call.1} parent=11 // pred_region
          %s123 = ssub.s32 128, 128
          %124 = vsyncadd [#allocation6], %s123
          %s126 = sshll.u32 [#allocation5], 4
          %s127 = int_to_ptr.vmem [resolvable:$true] %s126
          %129 = dma.hbm_to_vmem [thread:$0]  %s1, 128, %s127, [#allocation6]
        $region16: #{tpu_custom_call.1} parent=11 // pred_fallthru
          _
      $region12: #{tpu_custom_call.1} parent=5 // pred_fallthru
        _
      %p130 = scmp.lt.s32.totalorder %s15, 2
      // Predicated region
      $region17: #{tpu_custom_call.1} parent=5 // pred_check
        %p131 = pneg %p130
      $region18: #{tpu_custom_call.1} parent=5 // pred_check_branch
        %133 = sbr.rel (%p131) target = $region20
      $region19: #{tpu_custom_call.1} parent=5 // pred_region
        // Predicated region
        $region21: #{tpu_custom_call.1} parent=19 // pred_check
          %p134 = pneg %p49
        $region22: #{tpu_custom_call.1} parent=19 // pred_check_branch
          %136 = sbr.rel (%p134) target = $region24
        $region23: #{tpu_custom_call.1} parent=19 // pred_region
          %s137 = sand.u32 %s39, 1
          %s138 = scalar_lea.sflag [#allocation3], %s137
          %s139 = sand.u32 %s39, 1
          %s140 = smul.addr %s139, 8
          %s141 = scalar_lea.vmem [#allocation2], %s140
          %s143 = ssub.s32 128, 128
          %144 = vsyncadd %s138, %s143
          %s145 = smul.addr %s23, 2
          %s146 = smul.addr %s22, 2
          %s147 = sadd.s32 %s145, %s146
          %s148 = smul.addr %s147, 64
          %s149 = scalar_lea.hbm %s0, %s148
          %s151 = sshll.u32 %s141, 4
          %s152 = int_to_ptr.vmem [resolvable:$true] %s151
          %154 = dma.hbm_to_vmem [thread:$0]  %s149, 128, %s152, %s138
        $region24: #{tpu_custom_call.1} parent=19 // pred_fallthru
          _
      $region20: #{tpu_custom_call.1} parent=5 // pred_fallthru
        _
      %p155 = scmp.le.s32.totalorder 1, %s15
      %p156 = scmp.lt.s32.totalorder %s15, 3
      %p157 = pnand %p155, %p156
      %p158 = pneg %p157
      // Predicated region
      $region25: #{tpu_custom_call.1} parent=5 // pred_check
        _
      $region26: #{tpu_custom_call.1} parent=5 // pred_check_branch
        %160 = sbr.rel (%p157) target = $region28
      $region27: #{tpu_custom_call.1} parent=5 // pred_region
        %s161 = ssub.s32 %s15, 1
        %s162 = sand.u32 %s42, 1
        %s163 = scalar_lea.sflag [#allocation3], %s162
        %s164 = sand.u32 %s42, 1
        %s165 = smul.addr %s164, 8
        %s166 = scalar_lea.vmem [#allocation2], %s165
        // Predicated region
        $region29: #{tpu_custom_call.1} parent=27 // pred_check
          %p167 = pneg %p55
        $region30: #{tpu_custom_call.1} parent=27 // pred_check_branch
          %169 = sbr.rel (%p167) target = $region32
        $region31: #{tpu_custom_call.1} parent=27 // pred_region
          %170 = dma.done %s163, 128
        $region32: #{tpu_custom_call.1} parent=27 // pred_fallthru
          _
        // Predicated region
        $region33: #{tpu_custom_call.1} parent=27 // pred_check
          %p171 = pneg %p76
        $region34: #{tpu_custom_call.1} parent=27 // pred_check_branch
          %173 = sbr.rel (%p171) target = $region36
        $region35: #{tpu_custom_call.1} parent=27 // pred_region
          %174 = dma.done [#allocation6], 128
        $region36: #{tpu_custom_call.1} parent=27 // pred_fallthru
          _
        %s175 = sand.u32 %s42, 1
        %s176 = scalar_lea.sflag [#allocation3], %s175
        %s177 = sand.u32 %s42, 1
        %s178 = smul.addr %s177, 8
        %s179 = scalar_lea.vmem [#allocation2], %s178
        %p180 = pneg %p55
        %p181 = pneg %p52
        %p182 = pneg %p76
        %p183 = pneg %p73
        %p184 = pneg %p104
        %p185 = pneg %p101
        %s186 = sand.u32 %s91, 1
        %s187 = scalar_lea.sflag [#allocation4], %s186
        %s188 = sand.u32 %s91, 1
        %s189 = smul.addr %s188, 2
        %s190 = scalar_lea.vmem [#allocation7], %s189
        %v191 = vld [vmem:[%s166] sm:$0xff]
        %v193 = vcombine.high %v191, %v191
        %vm195 = vcmask 1043456
        %v196 = vsel %vm195, %v191, -inf
        %v197 = vsel %vm195, %v193, -inf
        %v198 = vmax.f32 %v196, %v197
        %199 = vmax.xlane.f32.xlu0 %v198
        %v200 = vpop.xlane.xlu0 %199
        %v203 = vunpack.c.l.s4 839922192
        %v204 = vunpack.c.0.s8 %v203
        %v205 = vlaneseq
        %v206 = vshrl.u32 %v205, 7
        %v207 = vsub.s32 %v204, %v206
        %v208 = vrot.slane %v200, %v207
        %v210 = vsub.f32 %v191, %v208
        %v211 = vmul.f32 %v210, 1.442695
        %v212 = vpow.pop %v211
        %v213 = vld [vmem:[#allocation5] sm:$0x77]
        %v215 = vcombine.high %v213, %v213
        %v218 = vcombine.high %v212, %v212
        %220 = vmatprep.subr.mxu0 %v218
        %221 = vmatpush1.xpose.msra.mxu0 %v212
        %222 = vmatprep.subr.mxu0 0.0
        %223 = vmatpush1.xpose.msra.mxu0 0.0
        %224 = vmatprep.subr.mxu0 0.0
        %225 = vmatpush1.xpose.msra.mxu0 0.0
        %226 = vmatprep.subr.mxu0 0.0
        %227 = vmatpush1.xpose.msra.mxu0 0.0
        %228 = vmatprep.subr.mxu0 0.0
        %229 = vmatpush1.xpose.msra.mxu0 0.0
        %230 = vmatprep.subr.mxu0 0.0
        %231 = vmatpush1.xpose.msra.mxu0 0.0
        %232 = vmatprep.subr.mxu0 0.0
        %233 = vmatpush1.xpose.msra.mxu0 0.0
        %234 = vmatprep.subr.mxu0 0.0
        %235 = vmatpush1.xpose.msra.mxu0 0.0
        %236 = vmatprep.subr.mxu0 0.0
        %237 = vmatpush1.xpose.msra.mxu0 0.0
        %238 = vmatprep.subr.mxu0 0.0
        %239 = vmatpush1.xpose.msra.mxu0 0.0
        %240 = vmatprep.subr.mxu0 0.0
        %241 = vmatpush1.xpose.msra.mxu0 0.0
        %242 = vmatprep.subr.mxu0 0.0
        %243 = vmatpush1.xpose.msra.mxu0 0.0
        %244 = vmatprep.subr.mxu0 0.0
        %245 = vmatpush1.xpose.msra.mxu0 0.0
        %246 = vmatprep.subr.mxu0 0.0
        %247 = vmatpush1.xpose.msra.mxu0 0.0
        %248 = vmatprep.subr.mxu0 0.0
        %249 = vmatpush1.xpose.msra.mxu0 0.0
        %250 = vmatprep.subr.mxu0 0.0
        %251 = vmatpush1.xpose.msra.mxu0 0.0
        %252 = vmatprep.subr.mxu0 0.0
        %253 = vmatpush1.xpose.msra.mxu0 0.0
        %254 = vmatprep.subr.mxu0 0.0
        %255 = vmatpush1.xpose.msra.mxu0 0.0
        %256 = vmatprep.subr.mxu0 0.0
        %257 = vmatpush1.xpose.msra.mxu0 0.0
        %258 = vmatprep.subr.mxu0 0.0
        %259 = vmatpush1.xpose.msra.mxu0 0.0
        %260 = vmatprep.subr.mxu0 0.0
        %261 = vmatpush1.xpose.msra.mxu0 0.0
        %262 = vmatprep.subr.mxu0 0.0
        %263 = vmatpush1.xpose.msra.mxu0 0.0
        %264 = vmatprep.subr.mxu0 0.0
        %265 = vmatpush1.xpose.msra.mxu0 0.0
        %266 = vmatprep.subr.mxu0 0.0
        %267 = vmatpush1.xpose.msra.mxu0 0.0
        %268 = vmatprep.subr.mxu0 0.0
        %269 = vmatpush1.xpose.msra.mxu0 0.0
        %270 = vmatprep.subr.mxu0 0.0
        %271 = vmatpush1.xpose.msra.mxu0 0.0
        %272 = vmatprep.subr.mxu0 0.0
        %273 = vmatpush1.xpose.msra.mxu0 0.0
        %274 = vmatprep.subr.mxu0 0.0
        %275 = vmatpush1.xpose.msra.mxu0 0.0
        %276 = vmatprep.subr.mxu0 0.0
        %277 = vmatpush1.xpose.msra.mxu0 0.0
        %278 = vmatprep.subr.mxu0 0.0
        %279 = vmatpush1.xpose.msra.mxu0 0.0
        %280 = vmatprep.subr.mxu0 0.0
        %281 = vmatpush1.xpose.msra.mxu0 0.0
        %282 = vmatprep.subr.mxu0 0.0
        %283 = vmatpush1.xpose.msra.mxu0 0.0
        %284 = vmatprep.mubr.f32.mxu0 %v215
        %285 = vmatmul.mubr.f32.gmra.mrb[0].mxu0 %v213
        %v286 = vpop.f32.mrb[0].mxu0
        %v287 = vadd.f32 0.0, %v286
        %v288 = vpop.f32.mrb[0].mxu0
        %289 = vdwg.mxu0
        %v290 = vlaneseq
        %v291 = vshrl.u32 %v290, 7
        %v292 = vsub.s32 2, %v291
        %v293 = vrot.slane %v287, %v292
        %v294 = vrcp.pop %v293
        %v295 = vmul.f32 %v287, %v294
        %vm296 = vcmask 25600
        %297 = vst.msk [vmem:[%s190] sm:$0x3] %vm296, %v295
        %s298 = sand.u32 %s91, 1
        %s299 = scalar_lea.sflag [#allocation4], %s298
        %s300 = sand.u32 %s91, 1
        %s301 = smul.addr %s300, 2
        %s302 = scalar_lea.vmem [#allocation7], %s301
        // Predicated region
        $region37: #{tpu_custom_call.1} parent=27 // pred_check
          %p303 = pneg %p101
        $region38: #{tpu_custom_call.1} parent=27 // pred_check_branch
          %305 = sbr.rel (%p303) target = $region40
        $region39: #{tpu_custom_call.1} parent=27 // pred_region
          %s307 = ssub.s32 32, 32
          %308 = vsyncadd %s299, %s307
          %s309 = sadd.s32 %s25, %s24
          %s310 = smul.addr %s309, 32
          %s311 = scalar_lea.hbm %s2, %s310
          %s313 = sshll.u32 %s302, 4
          %s314 = int_to_ptr.vmem [resolvable:$true] %s313
          %316 = dma.vmem_to_hbm [thread:$0]  %s314, 32, %s311, %s299
        $region40: #{tpu_custom_call.1} parent=27 // pred_fallthru
          _
      $region28: #{tpu_custom_call.1} parent=5 // pred_fallthru
        _
      %p317 = scmp.le.s32.totalorder 2, %s15
      // Predicated region
      $region41: #{tpu_custom_call.1} parent=5 // pred_check
        %p318 = pneg %p317
      $region42: #{tpu_custom_call.1} parent=5 // pred_check_branch
        %320 = sbr.rel (%p318) target = $region44
      $region43: #{tpu_custom_call.1} parent=5 // pred_region
        %s321 = ssub.s32 %s15, 2
        // Predicated region
        $region45: #{tpu_custom_call.1} parent=43 // pred_check
          %p322 = pneg %p107
        $region46: #{tpu_custom_call.1} parent=43 // pred_check_branch
          %324 = sbr.rel (%p322) target = $region48
        $region47: #{tpu_custom_call.1} parent=43 // pred_region
          %s325 = sand.u32 %s92, 1
          %s326 = scalar_lea.sflag [#allocation4], %s325
          %s327 = sand.u32 %s92, 1
          %s328 = smul.addr %s327, 2
          %s329 = scalar_lea.vmem [#allocation7], %s328
          %330 = dma.done %s326, 32
        $region48: #{tpu_custom_call.1} parent=43 // pred_fallthru
          _
      $region44: #{tpu_custom_call.1} parent=5 // pred_fallthru
        _
    $region6: #{tpu_custom_call.1} parent=1 // loop_footer
      %s19 = sadd.s32 1, %s15
    $region7: #{tpu_custom_call.1} parent=1 // loop_footer_branch
      %14 = sbr.rel target = $region3
    $region8: #{tpu_custom_call.1} parent=1 // loop_exit
      _
    %331 = vsyncpa [#allocation3], 1
    %s332 = scalar_lea.sflag [#allocation3], 1
    %333 = vsyncpa %s332, 1
    %334 = vsyncpa [#allocation6], 1
    %335 = vsyncpa [#allocation4], 1
    %s336 = scalar_lea.sflag [#allocation4], 1
    %337 = vsyncpa %s336, 1

</llo_original>
